<compile_context>
chip_gen: v7x
topology: tpu7x:2x2x1
jax: 0.10.0
libtpu: 0.0.40
codegen_flags: <defaults>
</compile_context>

<pallas_src>
import functools

import jax
import jax.numpy as jnp
from jax.experimental import pallas as pl
from jax.experimental.pallas import tpu as pltpu


def _emd_kernel(x_ref, y_ref, o_ref, *, td, num_chunks):
    x = x_ref[...].astype(jnp.float32)          # (TB, D)
    y = y_ref[...].astype(jnp.float32)          # (TB, D)

    eps = jnp.float32(1e-12)
    l1x = jnp.maximum(jnp.sum(jnp.abs(x), axis=1, keepdims=True), eps)
    l1y = jnp.maximum(jnp.sum(jnp.abs(y), axis=1, keepdims=True), eps)
    d = x / l1x - y / l1y                       # (TB, D)

    # TD x TD upper-triangular (incl. diagonal) ones, built in-kernel on the
    # VPU: tri[j, i] = 1 if j <= i, so d_chunk @ tri = in-chunk cumsum.
    row = jax.lax.broadcasted_iota(jnp.int32, (td, td), 0)
    col = jax.lax.broadcasted_iota(jnp.int32, (td, td), 1)
    tri = (row <= col).astype(jnp.float32)

    tb = d.shape[0]
    carry = jnp.zeros((tb, 1), jnp.float32)     # running row-sum of previous chunks
    total = jnp.zeros((), jnp.float32)

    for c in range(num_chunks):                 # static, small trip count
        chunk = d[:, c * td:(c + 1) * td]       # (TB, TD) static slice
        cdf = jnp.dot(chunk, tri, preferred_element_type=jnp.float32) + carry
        total = total + jnp.sum(jnp.abs(cdf))   # single fused reduction per chunk
        if c + 1 < num_chunks:
            carry = carry + jnp.sum(chunk, axis=1, keepdims=True)

    # Lane-dense partial-sum store for this batch tile (no cross-step RMW).
    o_ref[...] = jnp.full(o_ref.shape, total, dtype=o_ref.dtype)


def _pick_bin_tile(D, max_td=512):
    """Largest bin-chunk TD <= max_td that divides D (prefer multiples of 128)."""
    if D <= max_td:
        return D
    for td in range(max_td, 127, -1):
        if D % td == 0 and td % 128 == 0:
            return td
    for td in range(max_td, 0, -1):
        if D % td == 0:
            return td
    return D


def earth_movers_loss(x, y, *, batch_tile=None, max_bin_tile=512):
    assert x.shape == y.shape and x.ndim == 2
    B, D = x.shape

    # Batch tile: 256 rows fills the 256-wide MXU on v6e/v7x while keeping
    # 2 inputs x 2 buffers x tile well inside every generation's VMEM budget;
    # fall back to the full batch (full-array block) when it does not divide.
    if batch_tile is None:
        batch_tile = 256 if (B > 256 and B % 256 == 0) else B
    assert B % batch_tile == 0
    num_tiles = B // batch_tile

    td = _pick_bin_tile(D, max_bin_tile)
    num_chunks = D // td

    kernel = functools.partial(_emd_kernel, td=td, num_chunks=num_chunks)

    itemsize = jnp.dtype(x.dtype).itemsize
    cost = pl.CostEstimate(
        flops=2 * B * D * td,                          # chunked triangular matmuls
        bytes_accessed=2 * B * D * itemsize + num_tiles * 128 * 4,
        transcendentals=0,
    )

    partials = pl.pallas_call(
        kernel,
        out_shape=jax.ShapeDtypeStruct((num_tiles, 128), jnp.float32),
        grid_spec=pltpu.PrefetchScalarGridSpec(
            num_scalar_prefetch=0,
            grid=(num_tiles,),
            in_specs=[
                pl.BlockSpec((batch_tile, D), lambda b: (b, 0)),
                pl.BlockSpec((batch_tile, D), lambda b: (b, 0)),
            ],
            out_specs=pl.BlockSpec((1, 128), lambda b: (b, 0)),
        ),
        compiler_params=pltpu.CompilerParams(
            dimension_semantics=("parallel",),         # independent per-tile outputs
        ),
        cost_estimate=cost,
    )(x, y)

    # Final mean over the batch (tiny reduction, done in plain JAX).
    return jnp.sum(partials[:, 0]) / B


def _reference(x, y):
    eps = 1e-12
    xn = x / jnp.maximum(jnp.sum(jnp.abs(x), axis=1, keepdims=True), eps)
    yn = y / jnp.maximum(jnp.sum(jnp.abs(y), axis=1, keepdims=True), eps)
    cdf_x = jnp.cumsum(xn, axis=1)
    cdf_y = jnp.cumsum(yn, axis=1)
    emd = jnp.sum(jnp.abs(cdf_x - cdf_y), axis=1)
    return jnp.mean(emd)


if __name__ == "__main__":
    key = jax.random.PRNGKey(0)
    kx, ky = jax.random.split(key)
    B, D = 8, 128
    x = jax.random.normal(kx, (B, D), dtype=jnp.float32)
    y = jax.random.normal(ky, (B, D), dtype=jnp.float32)

    loss = earth_movers_loss(x, y)
    loss = jax.block_until_ready(loss)

    ref = _reference(x, y)
    assert jnp.allclose(loss, ref, rtol=1e-5, atol=1e-5), (loss, ref)
    print("KERNEL_OK")
</pallas_src>

<mosaic_0001>
module attributes {stable_mosaic.version = 11 : i64} {
  func.func @_emd_kernel(%arg0: i32, %arg1: memref<8x128xf32, #tpu.memory_space<vmem>>, %arg2: memref<8x128xf32, #tpu.memory_space<vmem>>, %arg3: memref<1x128xf32, #tpu.memory_space<vmem>>) attributes {dimension_semantics = [#tpu.dimension_semantics<parallel>], iteration_bounds = array<i64: 1>, scalar_prefetch = 0 : i64, scratch_operands = 0 : i64, tpu.core_type = #tpu.core_type<tc>, window_params = [{transform_indices = @transform_0, window_bounds = array<i64: 8, 128>}, {transform_indices = @transform_1, window_bounds = array<i64: 8, 128>}, {transform_indices = @transform_2, window_bounds = array<i64: 1, 128>}]} {
    %c0 = arith.constant 0 : index
    %c0_0 = arith.constant 0 : index
    %0 = vector.load %arg1[%c0, %c0_0] : memref<8x128xf32, #tpu.memory_space<vmem>>, vector<8x128xf32>
    %c0_1 = arith.constant 0 : index
    %c0_2 = arith.constant 0 : index
    %1 = vector.load %arg2[%c0_1, %c0_2] : memref<8x128xf32, #tpu.memory_space<vmem>>, vector<8x128xf32>
    %2 = math.absf %0 : vector<8x128xf32>
    %cst = arith.constant dense<0.000000e+00> : vector<8xf32>
    %3 = vector.multi_reduction <add>, %2, %cst [1] : vector<8x128xf32> to vector<8xf32>
    %4 = vector.shape_cast %3 : vector<8xf32> to vector<8x1xf32>
    %cst_3 = arith.constant 9.99999996E-13 : f32
    %5 = vector.broadcast %cst_3 : f32 to vector<8x1xf32>
    %6 = arith.maximumf %4, %5 : vector<8x1xf32>
    %7 = math.absf %1 : vector<8x128xf32>
    %cst_4 = arith.constant dense<0.000000e+00> : vector<8xf32>
    %8 = vector.multi_reduction <add>, %7, %cst_4 [1] : vector<8x128xf32> to vector<8xf32>
    %9 = vector.shape_cast %8 : vector<8xf32> to vector<8x1xf32>
    %cst_5 = arith.constant 9.99999996E-13 : f32
    %10 = vector.broadcast %cst_5 : f32 to vector<8x1xf32>
    %11 = arith.maximumf %9, %10 : vector<8x1xf32>
    %12 = vector.broadcast %6 : vector<8x1xf32> to vector<8x128xf32>
    %13 = arith.divf %0, %12 : vector<8x128xf32>
    %14 = vector.broadcast %11 : vector<8x1xf32> to vector<8x128xf32>
    %15 = arith.divf %1, %14 : vector<8x128xf32>
    %16 = arith.subf %13, %15 : vector<8x128xf32>
    %17 = tpu.iota {dimensions = array<i32: 0>} : vector<128x128xi32>
    %18 = tpu.iota {dimensions = array<i32: 1>} : vector<128x128xi32>
    %19 = arith.cmpi sle, %17, %18 : vector<128x128xi32>
    %20 = arith.extui %19 : vector<128x128xi1> to vector<128x128xi32>
    %21 = arith.sitofp %20 : vector<128x128xi32> to vector<128x128xf32>
    %cst_6 = arith.constant 0.000000e+00 : f32
    %22 = vector.broadcast %cst_6 : f32 to vector<8x1xf32>
    %cst_7 = arith.constant dense<0.000000e+00> : vector<8x128xf32>
    %23 = tpu.matmul %16, %21, %cst_7 {dimension_numbers = #tpu.dot_dimension_numbers<[1], [0], [0], [1], [0, 0, 1, 1], [], []>} : vector<8x128xf32>, vector<128x128xf32>, vector<8x128xf32> -> vector<8x128xf32>
    %24 = vector.broadcast %22 : vector<8x1xf32> to vector<8x128xf32>
    %25 = arith.addf %23, %24 : vector<8x128xf32>
    %26 = math.absf %25 : vector<8x128xf32>
    %27 = vector.shape_cast %26 : vector<8x128xf32> to vector<1x8x128xf32>
    %cst_8 = arith.constant dense<0.000000e+00> : vector<1xf32>
    %28 = vector.multi_reduction <add>, %27, %cst_8 [1, 2] : vector<1x8x128xf32> to vector<1xf32>
    %29 = vector.shape_cast %28 : vector<1xf32> to vector<1x1x1xf32>
    %30 = vector.extract %29[0, 0, 0] : f32 from vector<1x1x1xf32>
    %cst_9 = arith.constant 0.000000e+00 : f32
    %31 = arith.addf %cst_9, %30 : f32
    %32 = vector.broadcast %31 : f32 to vector<1x128xf32>
    %c0_10 = arith.constant 0 : index
    %c0_11 = arith.constant 0 : index
    %33 = vector.load %arg3[%c0_10, %c0_11] : memref<1x128xf32, #tpu.memory_space<vmem>>, vector<1x128xf32>
    tpu.vector_store %arg3[%c0_10, %c0_11], %32 {strides = array<i32>} : memref<1x128xf32, #tpu.memory_space<vmem>>, vector<1x128xf32>,
    return
  }
  func.func @transform_0(%arg0: i32) -> (i32, i32) {
    %c0_i32 = arith.constant 0 : i32
    %c0_i32_0 = arith.constant 0 : i32
    return %arg0, %c0_i32 : i32, i32
  }
  func.func @transform_1(%arg0: i32) -> (i32, i32) {
    %c0_i32 = arith.constant 0 : i32
    %c0_i32_0 = arith.constant 0 : i32
    return %arg0, %c0_i32 : i32, i32
  }
  func.func @transform_2(%arg0: i32) -> (i32, i32) {
    %c0_i32 = arith.constant 0 : i32
    %c0_i32_0 = arith.constant 0 : i32
    return %arg0, %c0_i32 : i32, i32
  }
}

</mosaic_0001>

<llo_original>
// kernel: tpu_custom_call.1
$region0: #{tpu_custom_call.1}
  #allocation0 [shape = 'u32[]', space=smem, size = 0x4, offset = 0x4, fixed_abs, tag = 'smem constant byte address 0x4 - core index']
  #allocation1 [shape = 'u32[144,128]{1,0:T(1,128)}', space=vmem, size = 0x12000, scoped, tag = 'internal scratch']
  %s0 = inlined_call_operand.hbm [shape: f32[8,128], index: 0, kind: input, shape index: {}]
  %s1 = inlined_call_operand.hbm [shape: f32[8,128], index: 1, kind: input, shape index: {}]
  %s2 = inlined_call_operand.hbm [shape: f32[1,128], index: 2, kind: output, shape index: {}]
  %s3 = sld [smem:[#allocation0]]
  $region26: #{tpu_custom_call.1} parent=0
    _
  %s5 = ssub.s32 1, %s3
  %s6 = scalar_select 0, %s5, %s3
  $region1: #{tpu_custom_call.1} parent=0
    #allocation2 [shape = 'u8[4096]{0}', space=vmem, size = 0x1000, scoped, tag = 'input window, operand 0, single buffered']
    #allocation3 [shape = 's32[1]{0}', space=sflag, size = 0x4, scoped, tag = 'scoped memory for tpu_custom_call.1']
    #allocation4 [shape = 's32[1]{0}', space=sflag, size = 0x4, scoped, tag = 'scoped memory for tpu_custom_call.1']
    #allocation5 [shape = 'u8[4096]{0}', space=vmem, size = 0x1000, scoped, tag = 'input window, operand 1, single buffered']
    #allocation6 [shape = 's32[1]{0}', space=sflag, size = 0x4, scoped, tag = 'scoped memory for tpu_custom_call.1']
    #allocation7 [shape = 'u8[512]{0}', space=vmem, size = 0x400, scoped, tag = 'output window, operand 0, single buffered']
    %7 = vsyncpa [#allocation3], 0
    %8 = vsyncpa [#allocation6], 0
    %9 = vsyncpa [#allocation4], 0
    // Predicated region
    $region2: #{tpu_custom_call.1} parent=1 // pred_check
      _
    $region3: #{tpu_custom_call.1} parent=1 // pred_check_branch
      %11 = sbr.rel (0) target = $region5
    $region4: #{tpu_custom_call.1} parent=1 // pred_region
      %s13 = ssub.s32 128, 128
      %14 = vsyncadd [#allocation3], %s13
      %s16 = sshll.u32 [#allocation2], 4
      %s17 = int_to_ptr.vmem [resolvable:$true] %s16
      %19 = dma.hbm_to_vmem [thread:$0]  %s0, 128, %s17, [#allocation3]
    $region5: #{tpu_custom_call.1} parent=1 // pred_fallthru
      _
    // Predicated region
    $region6: #{tpu_custom_call.1} parent=1 // pred_check
      _
    $region7: #{tpu_custom_call.1} parent=1 // pred_check_branch
      %21 = sbr.rel (0) target = $region9
    $region8: #{tpu_custom_call.1} parent=1 // pred_region
      %s23 = ssub.s32 128, 128
      %24 = vsyncadd [#allocation6], %s23
      %s26 = sshll.u32 [#allocation5], 4
      %s27 = int_to_ptr.vmem [resolvable:$true] %s26
      %29 = dma.hbm_to_vmem [thread:$0]  %s1, 128, %s27, [#allocation6]
    $region9: #{tpu_custom_call.1} parent=1 // pred_fallthru
      _
    // Predicated region
    $region10: #{tpu_custom_call.1} parent=1 // pred_check
      _
    $region11: #{tpu_custom_call.1} parent=1 // pred_check_branch
      %31 = sbr.rel (0) target = $region13
    $region12: #{tpu_custom_call.1} parent=1 // pred_region
      %32 = dma.done [#allocation3], 128
    $region13: #{tpu_custom_call.1} parent=1 // pred_fallthru
      _
    // Predicated region
    $region14: #{tpu_custom_call.1} parent=1 // pred_check
      _
    $region15: #{tpu_custom_call.1} parent=1 // pred_check_branch
      %34 = sbr.rel (0) target = $region17
    $region16: #{tpu_custom_call.1} parent=1 // pred_region
      %35 = dma.done [#allocation6], 128
    $region17: #{tpu_custom_call.1} parent=1 // pred_fallthru
      _
    %v36 = vld [vmem:[#allocation2] sm:$0xff]
    %v37 = vld [vmem:[#allocation5] sm:$0xff]
    %v38 = vand.u32 2147483647, %v36
    %39 = vadd.xlane.f32.xlu0 %v38
    %v40 = vpop.xlane.xlu0 %39
    %v41 = vmax.f32 %v40, 1e-12
    %v42 = vand.u32 2147483647, %v37
    %43 = vadd.xlane.f32.xlu0 %v42
    %v44 = vpop.xlane.xlu0 %43
    %v45 = vmax.f32 %v44, 1e-12
    %v46 = vrcp.pop %v41
    %v47 = vmul.f32 %v36, %v46
    %v48 = vrcp.pop %v45
    %v49 = vmul.f32 %v37, %v48
    %v50 = vsub.f32 %v47, %v49
    %v51 = vlaneseq
    %v52 = vshrl.u32 %v51, 7
    %v53 = vadd.s32 %v52, 8
    %v54 = vadd.s32 %v52, 16
    %v55 = vadd.s32 %v52, 24
    %v56 = vadd.s32 %v52, 32
    %v57 = vadd.s32 %v52, 40
    %v58 = vadd.s32 %v52, 48
    %v59 = vadd.s32 %v52, 56
    %v60 = vadd.s32 %v52, 64
    %v61 = vadd.s32 %v52, 72
    %v62 = vadd.s32 %v52, 80
    %v63 = vadd.s32 %v52, 88
    %v64 = vadd.s32 %v52, 96
    %v65 = vadd.s32 %v52, 104
    %v66 = vadd.s32 %v52, 112
    %v67 = vadd.s32 %v52, 120
    %v68 = vlaneseq
    %v69 = vand.u32 %v68, 127
    %vm70 = vcmp.le.s32.totalorder %v52, %v69
    %vm71 = vcmp.le.s32.totalorder %v53, %v69
    %vm72 = vcmp.le.s32.totalorder %v54, %v69
    %vm73 = vcmp.le.s32.totalorder %v55, %v69
    %vm74 = vcmp.le.s32.totalorder %v56, %v69
    %vm75 = vcmp.le.s32.totalorder %v57, %v69
    %vm76 = vcmp.le.s32.totalorder %v58, %v69
    %vm77 = vcmp.le.s32.totalorder %v59, %v69
    %vm78 = vcmp.le.s32.totalorder %v60, %v69
    %vm79 = vcmp.le.s32.totalorder %v61, %v69
    %vm80 = vcmp.le.s32.totalorder %v62, %v69
    %vm81 = vcmp.le.s32.totalorder %v63, %v69
    %vm82 = vcmp.le.s32.totalorder %v64, %v69
    %vm83 = vcmp.le.s32.totalorder %v65, %v69
    %vm84 = vcmp.le.s32.totalorder %v66, %v69
    %vm85 = vcmp.le.s32.totalorder %v67, %v69
    %v86 = vsel %vm70, 1, 0
    %v87 = vsel %vm71, 1, 0
    %v88 = vsel %vm72, 1, 0
    %v89 = vsel %vm73, 1, 0
    %v90 = vsel %vm74, 1, 0
    %v91 = vsel %vm75, 1, 0
    %v92 = vsel %vm76, 1, 0
    %v93 = vsel %vm77, 1, 0
    %v94 = vsel %vm78, 1, 0
    %v95 = vsel %vm79, 1, 0
    %v96 = vsel %vm80, 1, 0
    %v97 = vsel %vm81, 1, 0
    %v98 = vsel %vm82, 1, 0
    %v99 = vsel %vm83, 1, 0
    %v100 = vsel %vm84, 1, 0
    %v101 = vsel %vm85, 1, 0
    %v102 = vcvt.s32.f32 %v86
    %v103 = vcvt.s32.f32 %v87
    %v104 = vcvt.s32.f32 %v88
    %v105 = vcvt.s32.f32 %v89
    %v106 = vcvt.s32.f32 %v90
    %v107 = vcvt.s32.f32 %v91
    %v108 = vcvt.s32.f32 %v92
    %v109 = vcvt.s32.f32 %v93
    %v110 = vcvt.s32.f32 %v94
    %v111 = vcvt.s32.f32 %v95
    %v112 = vcvt.s32.f32 %v96
    %v113 = vcvt.s32.f32 %v97
    %v114 = vcvt.s32.f32 %v98
    %v115 = vcvt.s32.f32 %v99
    %v116 = vcvt.s32.f32 %v100
    %v117 = vcvt.s32.f32 %v101
    %118 = vmatprep.subr.mxu0 0.0
    %119 = vmatpush1.msra.mxu0 %v102
    %120 = vmatprep.subr.mxu0 0.0
    %121 = vmatpush1.msra.mxu0 %v103
    %122 = vmatprep.subr.mxu0 0.0
    %123 = vmatpush1.msra.mxu0 %v104
    %124 = vmatprep.subr.mxu0 0.0
    %125 = vmatpush1.msra.mxu0 %v105
    %126 = vmatprep.subr.mxu0 0.0
    %127 = vmatpush1.msra.mxu0 %v106
    %128 = vmatprep.subr.mxu0 0.0
    %129 = vmatpush1.msra.mxu0 %v107
    %130 = vmatprep.subr.mxu0 0.0
    %131 = vmatpush1.msra.mxu0 %v108
    %132 = vmatprep.subr.mxu0 0.0
    %133 = vmatpush1.msra.mxu0 %v109
    %134 = vmatprep.subr.mxu0 0.0
    %135 = vmatpush1.msra.mxu0 %v110
    %136 = vmatprep.subr.mxu0 0.0
    %137 = vmatpush1.msra.mxu0 %v111
    %138 = vmatprep.subr.mxu0 0.0
    %139 = vmatpush1.msra.mxu0 %v112
    %140 = vmatprep.subr.mxu0 0.0
    %141 = vmatpush1.msra.mxu0 %v113
    %142 = vmatprep.subr.mxu0 0.0
    %143 = vmatpush1.msra.mxu0 %v114
    %144 = vmatprep.subr.mxu0 0.0
    %145 = vmatpush1.msra.mxu0 %v115
    %146 = vmatprep.subr.mxu0 0.0
    %147 = vmatpush1.msra.mxu0 %v116
    %148 = vmatprep.subr.mxu0 0.0
    %149 = vmatpush1.msra.mxu0 %v117
    %150 = vmatprep.subr.mxu0 0.0
    %151 = vmatpush1.msra.mxu0 0.0
    %152 = vmatprep.subr.mxu0 0.0
    %153 = vmatpush1.msra.mxu0 0.0
    %154 = vmatprep.subr.mxu0 0.0
    %155 = vmatpush1.msra.mxu0 0.0
    %156 = vmatprep.subr.mxu0 0.0
    %157 = vmatpush1.msra.mxu0 0.0
    %158 = vmatprep.subr.mxu0 0.0
    %159 = vmatpush1.msra.mxu0 0.0
    %160 = vmatprep.subr.mxu0 0.0
    %161 = vmatpush1.msra.mxu0 0.0
    %162 = vmatprep.subr.mxu0 0.0
    %163 = vmatpush1.msra.mxu0 0.0
    %164 = vmatprep.subr.mxu0 0.0
    %165 = vmatpush1.msra.mxu0 0.0
    %166 = vmatprep.subr.mxu0 0.0
    %167 = vmatpush1.msra.mxu0 0.0
    %168 = vmatprep.subr.mxu0 0.0
    %169 = vmatpush1.msra.mxu0 0.0
    %170 = vmatprep.subr.mxu0 0.0
    %171 = vmatpush1.msra.mxu0 0.0
    %172 = vmatprep.subr.mxu0 0.0
    %173 = vmatpush1.msra.mxu0 0.0
    %174 = vmatprep.subr.mxu0 0.0
    %175 = vmatpush1.msra.mxu0 0.0
    %176 = vmatprep.subr.mxu0 0.0
    %177 = vmatpush1.msra.mxu0 0.0
    %178 = vmatprep.subr.mxu0 0.0
    %179 = vmatpush1.msra.mxu0 0.0
    %180 = vmatprep.subr.mxu0 0.0
    %181 = vmatpush1.msra.mxu0 0.0
    %182 = vmatprep.mubr.f32.mxu0 0.0
    %183 = vmatmul.mubr.f32.gmra.mrb[0].mxu0 %v50
    %v184 = vpop.f32.mrb[0].mxu0
    %v185 = vadd.f32 0.0, %v184
    %v186 = vpop.f32.mrb[0].mxu0
    %187 = vdwg.mxu0
    %v188 = vand.u32 2147483647, %v185
    %189 = vadd.xlane.f32.xlu0 %v188
    %v190 = vpop.xlane.xlu0 %189
    %v191 = vrot.slane %v190, 4
    %v192 = vadd.f32 %v190, %v191
    %v193 = vrot.slane %v192, 2
    %v194 = vadd.f32 %v192, %v193
    %v195 = vrot.slane %v194, 1
    %v196 = vadd.f32 %v194, %v195
    %s197 = vtos %v196
    %s198 = sadd.f32 %s197, 0.0
    %v199 = vstv %s198
    %200 = vst [vmem:[#allocation7] sm:$0x1] %v199
    // Predicated region
    $region18: #{tpu_custom_call.1} parent=1 // pred_check
      _
    $region19: #{tpu_custom_call.1} parent=1 // pred_check_branch
      %202 = sbr.rel (0) target = $region21
    $region20: #{tpu_custom_call.1} parent=1 // pred_region
      %s204 = ssub.s32 16, 16
      %205 = vsyncadd [#allocation4], %s204
      %s207 = sshll.u32 [#allocation7], 4
      %s208 = int_to_ptr.vmem [resolvable:$true] %s207
      %210 = dma.vmem_to_hbm [thread:$0]  %s208, 16, %s2, [#allocation4]
    $region21: #{tpu_custom_call.1} parent=1 // pred_fallthru
      _
    // Predicated region
    $region22: #{tpu_custom_call.1} parent=1 // pred_check
      _
    $region23: #{tpu_custom_call.1} parent=1 // pred_check_branch
      %212 = sbr.rel (0) target = $region25
    $region24: #{tpu_custom_call.1} parent=1 // pred_region
      %213 = dma.done [#allocation4], 16
    $region25: #{tpu_custom_call.1} parent=1 // pred_fallthru
      _
    %214 = vsyncpa [#allocation3], 1
    %215 = vsyncpa [#allocation6], 1
    %216 = vsyncpa [#allocation4], 1

</llo_original>
